<compile_context>
chip_gen: v7x
topology: tpu7x:2x2x1
jax: 0.10.0
libtpu: 0.0.40
codegen_flags: <defaults>
</compile_context>

<pallas_src>
import functools

import jax
import jax.numpy as jnp
from jax.experimental import pallas as pl
from jax.experimental.pallas import tpu as pltpu


# ------------------------------ fused kernel -------------------------------

def _sim_sppf_fused_kernel(x_ref, w1_ref, b1_ref,
                           w2a_ref, w2b_ref, w2c_ref, w2d_ref, b2_ref,
                           o_ref, *, H, W, k):
    """One batch element of SimSPPF, fully VMEM-resident.

    x_ref : (1, Cin, H*W)  input image in NCHW-flat layout (f32)
    w1    : (c_, Cin)      BN-folded cv1 weight (bf16), b1: (c_, 1) f32
    w2a-d : (Cout, c_)     BN-folded cv2 weight split along its input channels
                           (the concat [x1,y1,y2,y3] is never built), bf16
    o_ref : (1, Cout, H*W) output (f32), lane-dense store (H*W on lanes)
    """
    HW = H * W
    p = k // 2
    neg = jnp.float32(-jnp.inf)
    f32, bf16 = jnp.float32, jnp.bfloat16

    # ---- cv1: 1x1 conv + folded BN + ReLU as an MXU matmul ----------------
    x = x_ref[0].astype(bf16)                                   # (Cin, HW)
    x1 = jnp.dot(w1_ref[...], x, preferred_element_type=f32)    # (c_, HW)
    x1 = jnp.maximum(x1 + b1_ref[...], 0.0)                     # f32

    # ---- k x k / stride-1 / pad-(k//2) max pool on the flat (C, H*W) map --
    # Column index inside each image row: W-direction shifts must not leak
    # across row boundaries (this reproduces the -inf border padding).
    wpos = jax.lax.broadcasted_iota(jnp.int32, x1.shape, 1) % W
    right_ok = [wpos < (W - d) for d in range(1, p + 1)]   # neighbour w+d valid
    left_ok = [wpos >= d for d in range(1, p + 1)]         # neighbour w-d valid

    def shift_left(z, s):     # out[i] = z[i + s], -inf past the end
        fill = jnp.full((z.shape[0], s), neg, dtype=z.dtype)
        return jnp.concatenate([z[:, s:], fill], axis=1)

    def shift_right(z, s):    # out[i] = z[i - s], -inf before the start
        fill = jnp.full((z.shape[0], s), neg, dtype=z.dtype)
        return jnp.concatenate([fill, z[:, :HW - s]], axis=1)

    def pool(z):
        # W direction (within each row): masked lane shifts by +-1..p.
        m = z
        for d in range(1, p + 1):
            m = jnp.maximum(m, jnp.where(right_ok[d - 1], shift_left(z, d), neg))
            m = jnp.maximum(m, jnp.where(left_ok[d - 1], shift_right(z, d), neg))
        # H direction: neighbours sit +-d*W lanes away; the -inf fill of the
        # shift covers the top/bottom image borders exactly, no mask needed.
        out = m
        for d in range(1, p + 1):
            out = jnp.maximum(out, shift_left(m, d * W))
            out = jnp.maximum(out, shift_right(m, d * W))
        return out

    y1 = pool(x1)
    y2 = pool(y1)
    y3 = pool(y2)

    # ---- cv2 over concat([x1, y1, y2, y3], C) without building the concat -
    acc = jnp.dot(w2a_ref[...], x1.astype(bf16), preferred_element_type=f32)
    acc = acc + jnp.dot(w2b_ref[...], y1.astype(bf16), preferred_element_type=f32)
    acc = acc + jnp.dot(w2c_ref[...], y2.astype(bf16), preferred_element_type=f32)
    acc = acc + jnp.dot(w2d_ref[...], y3.astype(bf16), preferred_element_type=f32)
    o_ref[0] = jnp.maximum(acc + b2_ref[...], 0.0).astype(o_ref.dtype)


# --------------------------------- wrapper ----------------------------------

def _fold_bn_1x1(p, eps=1e-5):
    """Fold eval-mode BatchNorm2d into the bias-free 1x1 conv that feeds it."""
    scale = p["gamma"] / jnp.sqrt(p["var"] + eps)
    w = p["w"][:, :, 0, 0] * scale[:, None]              # (Cout, Cin)
    b = p["beta"] - p["mean"] * scale                    # (Cout,)
    return w.astype(jnp.bfloat16), b.astype(jnp.float32)


def sim_sppf_forward(x_nchw, params, kernel_size=5):
    N, Cin, H, W = x_nchw.shape
    c_ = params["cv1"]["w"].shape[0]
    Cout = params["cv2"]["w"].shape[0]
    HW = H * W

    w1, b1 = _fold_bn_1x1(params["cv1"])                 # (c_, Cin), (c_,)
    w2, b2 = _fold_bn_1x1(params["cv2"])                 # (Cout, 4*c_), (Cout,)
    w2_parts = [w2[:, i * c_:(i + 1) * c_] for i in range(4)]
    b1 = b1.reshape(c_, 1)
    b2 = b2.reshape(Cout, 1)

    # NCHW already presents (C, H*W) per image -> free reshape, NO transpose.
    x_flat = x_nchw.reshape(N, Cin, HW)

    kernel = functools.partial(
        _sim_sppf_fused_kernel, H=H, W=W, k=kernel_size)

    cost = pl.CostEstimate(
        flops=2 * N * HW * (c_ * Cin + 4 * c_ * Cout),
        transcendentals=0,
        bytes_accessed=(x_flat.size * x_flat.dtype.itemsize
                        + (w1.size + w2.size) * 2
                        + N * Cout * HW * 4))

    def full(shape):  # whole-array block, resident across the grid
        return pl.BlockSpec(shape, lambda n, _r=len(shape): (0,) * _r)

    out = pl.pallas_call(
        kernel,
        out_shape=jax.ShapeDtypeStruct((N, Cout, HW), jnp.float32),
        grid=(N,),
        in_specs=[
            pl.BlockSpec((1, Cin, HW), lambda n: (n, 0, 0)),
            full((c_, Cin)), full((c_, 1)),
            full((Cout, c_)), full((Cout, c_)), full((Cout, c_)), full((Cout, c_)),
            full((Cout, 1)),
        ],
        out_specs=pl.BlockSpec((1, Cout, HW), lambda n: (n, 0, 0)),
        compiler_params=pltpu.CompilerParams(
            dimension_semantics=("parallel",),           # even grid -> 2 TCs on v7x
            vmem_limit_bytes=32 * 1024 * 1024),           # explicit (v7x has 64 MiB)
        cost_estimate=cost,
    )(x_flat, w1, b1, *w2_parts, b2)

    return out.reshape(N, Cout, H, W)                    # free reshape, NO transpose


# ------------------------------- param init ---------------------------------

def init_sim_conv(key, cin, cout, k=1):
    k1, k2, k3, k4, k5 = jax.random.split(key, 5)
    return dict(
        w=jax.random.normal(k1, (cout, cin, k, k), jnp.float32) * 0.1,
        gamma=1.0 + 0.1 * jax.random.normal(k2, (cout,), jnp.float32),
        beta=0.1 * jax.random.normal(k3, (cout,), jnp.float32),
        mean=0.1 * jax.random.normal(k4, (cout,), jnp.float32),
        var=1.0 + 0.1 * jnp.abs(jax.random.normal(k5, (cout,), jnp.float32)),
    )


def init_sim_sppf(key, in_channels, out_channels):
    c_ = in_channels // 2
    k1, k2 = jax.random.split(key)
    return dict(
        cv1=init_sim_conv(k1, in_channels, c_, 1),
        cv2=init_sim_conv(k2, c_ * 4, out_channels, 1),
    )


# ----------------------------------- main -----------------------------------

if __name__ == "__main__":
    in_channels, out_channels = 16, 32
    N, H, W = 2, 16, 16

    key = jax.random.PRNGKey(0)
    kx, kp = jax.random.split(key)
    x = jax.random.normal(kx, (N, in_channels, H, W), jnp.float32)
    params = init_sim_sppf(kp, in_channels, out_channels)

    out = jax.jit(sim_sppf_forward)(x, params)
    out = jax.block_until_ready(out)

    assert out.shape == (N, out_channels, H, W), out.shape
    assert bool(jnp.all(jnp.isfinite(out)))
    print("KERNEL_OK")
</pallas_src>

<mosaic_0001>
module attributes {stable_mosaic.version = 11 : i64} {
  func.func @_sim_sppf_fused_kernel(%arg0: i32, %arg1: memref<1x16x256xf32, #tpu.memory_space<vmem>>, %arg2: memref<8x16xbf16, #tpu.memory_space<vmem>>, %arg3: memref<8x1xf32, #tpu.memory_space<vmem>>, %arg4: memref<32x8xbf16, #tpu.memory_space<vmem>>, %arg5: memref<32x8xbf16, #tpu.memory_space<vmem>>, %arg6: memref<32x8xbf16, #tpu.memory_space<vmem>>, %arg7: memref<32x8xbf16, #tpu.memory_space<vmem>>, %arg8: memref<32x1xf32, #tpu.memory_space<vmem>>, %arg9: memref<1x32x256xf32, #tpu.memory_space<vmem>>) attributes {dimension_semantics = [#tpu.dimension_semantics<parallel>], iteration_bounds = array<i64: 2>, scalar_prefetch = 0 : i64, scratch_operands = 0 : i64, tpu.core_type = #tpu.core_type<tc>, window_params = [{transform_indices = @transform_0, window_bounds = array<i64: 1, 16, 256>}, {pipeline_mode = #tpu.pipeline_mode<synchronous>, transform_indices = @transform_1, window_bounds = array<i64: 8, 16>}, {pipeline_mode = #tpu.pipeline_mode<synchronous>, transform_indices = @transform_2, window_bounds = array<i64: 8, 1>}, {pipeline_mode = #tpu.pipeline_mode<synchronous>, transform_indices = @transform_3, window_bounds = array<i64: 32, 8>}, {pipeline_mode = #tpu.pipeline_mode<synchronous>, transform_indices = @transform_4, window_bounds = array<i64: 32, 8>}, {pipeline_mode = #tpu.pipeline_mode<synchronous>, transform_indices = @transform_5, window_bounds = array<i64: 32, 8>}, {pipeline_mode = #tpu.pipeline_mode<synchronous>, transform_indices = @transform_6, window_bounds = array<i64: 32, 8>}, {pipeline_mode = #tpu.pipeline_mode<synchronous>, transform_indices = @transform_7, window_bounds = array<i64: 32, 1>}, {transform_indices = @transform_8, window_bounds = array<i64: 1, 32, 256>}]} {
    %c0 = arith.constant 0 : index
    %c0_0 = arith.constant 0 : index
    %c0_1 = arith.constant 0 : index
    %0 = vector.load %arg1[%c0, %c0_0, %c0_1] : memref<1x16x256xf32, #tpu.memory_space<vmem>>, vector<1x16x256xf32>
    %1 = vector.shape_cast %0 : vector<1x16x256xf32> to vector<16x256xf32>
    %2 = arith.truncf %1 : vector<16x256xf32> to vector<16x256xbf16>
    %c0_2 = arith.constant 0 : index
    %c0_3 = arith.constant 0 : index
    %3 = vector.load %arg2[%c0_2, %c0_3] : memref<8x16xbf16, #tpu.memory_space<vmem>>, vector<8x16xbf16>
    %cst = arith.constant dense<0.000000e+00> : vector<8x256xf32>
    %4 = tpu.matmul %3, %2, %cst {dimension_numbers = #tpu.dot_dimension_numbers<[1], [0], [0], [1], [0, 0, 1, 1], [], []>} : vector<8x16xbf16>, vector<16x256xbf16>, vector<8x256xf32> -> vector<8x256xf32>
    %c0_4 = arith.constant 0 : index
    %c0_5 = arith.constant 0 : index
    %5 = vector.load %arg3[%c0_4, %c0_5] : memref<8x1xf32, #tpu.memory_space<vmem>>, vector<8x1xf32>
    %6 = vector.broadcast %5 : vector<8x1xf32> to vector<8x256xf32>
    %7 = arith.addf %4, %6 : vector<8x256xf32>
    %cst_6 = arith.constant 0.000000e+00 : f32
    %8 = vector.broadcast %cst_6 : f32 to vector<8x256xf32>
    %9 = arith.maximumf %7, %8 : vector<8x256xf32>
    %10 = tpu.iota {dimensions = array<i32: 1>} : vector<8x256xi32>
    %c16_i32 = arith.constant 16 : i32
    %c0_i32 = arith.constant 0 : i32
    %11 = arith.cmpi eq, %c16_i32, %c0_i32 : i32
    %c1_i32 = arith.constant 1 : i32
    %12 = arith.select %11, %c1_i32, %c16_i32 : i32
    %13 = vector.broadcast %12 : i32 to vector<8x256xi32>
    %14 = arith.remsi %10, %13 : vector<8x256xi32>
    %c0_i32_7 = arith.constant 0 : i32
    %15 = vector.broadcast %c0_i32_7 : i32 to vector<8x256xi32>
    %16 = arith.cmpi ne, %14, %15 : vector<8x256xi32>
    %c0_i32_8 = arith.constant 0 : i32
    %17 = vector.broadcast %c0_i32_8 : i32 to vector<8x256xi32>
    %18 = arith.cmpi slt, %14, %17 : vector<8x256xi32>
    %c0_i32_9 = arith.constant 0 : i32
    %19 = arith.cmpi slt, %12, %c0_i32_9 : i32
    %20 = vector.broadcast %19 : i1 to vector<8x256xi1>
    %21 = vector.broadcast %20 : vector<8x256xi1> to vector<8x256xi1>
    %22 = arith.xori %18, %21 : vector<8x256xi1>
    %23 = arith.andi %22, %16 : vector<8x256xi1>
    %24 = vector.broadcast %12 : i32 to vector<8x256xi32>
    %25 = arith.addi %14, %24 : vector<8x256xi32>
    %26 = arith.select %23, %25, %14 : vector<8x256xi1>, vector<8x256xi32>
    %c15_i32 = arith.constant 15 : i32
    %27 = vector.broadcast %c15_i32 : i32 to vector<8x256xi32>
    %28 = arith.cmpi slt, %26, %27 : vector<8x256xi32>
    %c14_i32 = arith.constant 14 : i32
    %29 = vector.broadcast %c14_i32 : i32 to vector<8x256xi32>
    %30 = arith.cmpi slt, %26, %29 : vector<8x256xi32>
    %c1_i32_10 = arith.constant 1 : i32
    %31 = vector.broadcast %c1_i32_10 : i32 to vector<8x256xi32>
    %32 = arith.cmpi sge, %26, %31 : vector<8x256xi32>
    %c2_i32 = arith.constant 2 : i32
    %33 = vector.broadcast %c2_i32 : i32 to vector<8x256xi32>
    %34 = arith.cmpi sge, %26, %33 : vector<8x256xi32>
    %cst_11 = arith.constant 0xFF800000 : f32
    %35 = vector.broadcast %cst_11 : f32 to vector<8x1xf32>
    %36 = vector.extract_strided_slice %9 {offsets = [0, 1], sizes = [8, 255], strides = [1, 1]} : vector<8x256xf32> to vector<8x255xf32>
    %37 = tpu.concatenate %36, %35 in 1 : vector<8x255xf32>, vector<8x1xf32> -> vector<8x256xf32>
    %cst_12 = arith.constant 0xFF800000 : f32
    %38 = vector.broadcast %cst_12 : f32 to vector<8x256xf32>
    %39 = arith.select %28, %37, %38 : vector<8x256xi1>, vector<8x256xf32>
    %40 = arith.maximumf %9, %39 : vector<8x256xf32>
    %cst_13 = arith.constant 0xFF800000 : f32
    %41 = vector.broadcast %cst_13 : f32 to vector<8x1xf32>
    %42 = vector.extract_strided_slice %9 {offsets = [0, 0], sizes = [8, 255], strides = [1, 1]} : vector<8x256xf32> to vector<8x255xf32>
    %43 = tpu.concatenate %41, %42 in 1 : vector<8x1xf32>, vector<8x255xf32> -> vector<8x256xf32>
    %cst_14 = arith.constant 0xFF800000 : f32
    %44 = vector.broadcast %cst_14 : f32 to vector<8x256xf32>
    %45 = arith.select %32, %43, %44 : vector<8x256xi1>, vector<8x256xf32>
    %46 = arith.maximumf %40, %45 : vector<8x256xf32>
    %cst_15 = arith.constant 0xFF800000 : f32
    %47 = vector.broadcast %cst_15 : f32 to vector<8x2xf32>
    %48 = vector.extract_strided_slice %9 {offsets = [0, 2], sizes = [8, 254], strides = [1, 1]} : vector<8x256xf32> to vector<8x254xf32>
    %49 = tpu.concatenate %48, %47 in 1 : vector<8x254xf32>, vector<8x2xf32> -> vector<8x256xf32>
    %cst_16 = arith.constant 0xFF800000 : f32
    %50 = vector.broadcast %cst_16 : f32 to vector<8x256xf32>
    %51 = arith.select %30, %49, %50 : vector<8x256xi1>, vector<8x256xf32>
    %52 = arith.maximumf %46, %51 : vector<8x256xf32>
    %cst_17 = arith.constant 0xFF800000 : f32
    %53 = vector.broadcast %cst_17 : f32 to vector<8x2xf32>
    %54 = vector.extract_strided_slice %9 {offsets = [0, 0], sizes = [8, 254], strides = [1, 1]} : vector<8x256xf32> to vector<8x254xf32>
    %55 = tpu.concatenate %53, %54 in 1 : vector<8x2xf32>, vector<8x254xf32> -> vector<8x256xf32>
    %cst_18 = arith.constant 0xFF800000 : f32
    %56 = vector.broadcast %cst_18 : f32 to vector<8x256xf32>
    %57 = arith.select %34, %55, %56 : vector<8x256xi1>, vector<8x256xf32>
    %58 = arith.maximumf %52, %57 : vector<8x256xf32>
    %cst_19 = arith.constant 0xFF800000 : f32
    %59 = vector.broadcast %cst_19 : f32 to vector<8x16xf32>
    %60 = vector.extract_strided_slice %58 {offsets = [0, 16], sizes = [8, 240], strides = [1, 1]} : vector<8x256xf32> to vector<8x240xf32>
    %61 = tpu.concatenate %60, %59 in 1 : vector<8x240xf32>, vector<8x16xf32> -> vector<8x256xf32>
    %62 = arith.maximumf %58, %61 : vector<8x256xf32>
    %cst_20 = arith.constant 0xFF800000 : f32
    %63 = vector.broadcast %cst_20 : f32 to vector<8x16xf32>
    %64 = vector.extract_strided_slice %58 {offsets = [0, 0], sizes = [8, 240], strides = [1, 1]} : vector<8x256xf32> to vector<8x240xf32>
    %65 = tpu.concatenate %63, %64 in 1 : vector<8x16xf32>, vector<8x240xf32> -> vector<8x256xf32>
    %66 = arith.maximumf %62, %65 : vector<8x256xf32>
    %cst_21 = arith.constant 0xFF800000 : f32
    %67 = vector.broadcast %cst_21 : f32 to vector<8x32xf32>
    %68 = vector.extract_strided_slice %58 {offsets = [0, 32], sizes = [8, 224], strides = [1, 1]} : vector<8x256xf32> to vector<8x224xf32>
    %69 = tpu.concatenate %68, %67 in 1 : vector<8x224xf32>, vector<8x32xf32> -> vector<8x256xf32>
    %70 = arith.maximumf %66, %69 : vector<8x256xf32>
    %cst_22 = arith.constant 0xFF800000 : f32
    %71 = vector.broadcast %cst_22 : f32 to vector<8x32xf32>
    %72 = vector.extract_strided_slice %58 {offsets = [0, 0], sizes = [8, 224], strides = [1, 1]} : vector<8x256xf32> to vector<8x224xf32>
    %73 = tpu.concatenate %71, %72 in 1 : vector<8x32xf32>, vector<8x224xf32> -> vector<8x256xf32>
    %74 = arith.maximumf %70, %73 : vector<8x256xf32>
    %cst_23 = arith.constant 0xFF800000 : f32
    %75 = vector.broadcast %cst_23 : f32 to vector<8x1xf32>
    %76 = vector.extract_strided_slice %74 {offsets = [0, 1], sizes = [8, 255], strides = [1, 1]} : vector<8x256xf32> to vector<8x255xf32>
    %77 = tpu.concatenate %76, %75 in 1 : vector<8x255xf32>, vector<8x1xf32> -> vector<8x256xf32>
    %cst_24 = arith.constant 0xFF800000 : f32
    %78 = vector.broadcast %cst_24 : f32 to vector<8x256xf32>
    %79 = arith.select %28, %77, %78 : vector<8x256xi1>, vector<8x256xf32>
    %80 = arith.maximumf %74, %79 : vector<8x256xf32>
    %cst_25 = arith.constant 0xFF800000 : f32
    %81 = vector.broadcast %cst_25 : f32 to vector<8x1xf32>
    %82 = vector.extract_strided_slice %74 {offsets = [0, 0], sizes = [8, 255], strides = [1, 1]} : vector<8x256xf32> to vector<8x255xf32>
    %83 = tpu.concatenate %81, %82 in 1 : vector<8x1xf32>, vector<8x255xf32> -> vector<8x256xf32>
    %cst_26 = arith.constant 0xFF800000 : f32
    %84 = vector.broadcast %cst_26 : f32 to vector<8x256xf32>
    %85 = arith.select %32, %83, %84 : vector<8x256xi1>, vector<8x256xf32>
    %86 = arith.maximumf %80, %85 : vector<8x256xf32>
    %cst_27 = arith.constant 0xFF800000 : f32
    %87 = vector.broadcast %cst_27 : f32 to vector<8x2xf32>
    %88 = vector.extract_strided_slice %74 {offsets = [0, 2], sizes = [8, 254], strides = [1, 1]} : vector<8x256xf32> to vector<8x254xf32>
    %89 = tpu.concatenate %88, %87 in 1 : vector<8x254xf32>, vector<8x2xf32> -> vector<8x256xf32>
    %cst_28 = arith.constant 0xFF800000 : f32
    %90 = vector.broadcast %cst_28 : f32 to vector<8x256xf32>
    %91 = arith.select %30, %89, %90 : vector<8x256xi1>, vector<8x256xf32>
    %92 = arith.maximumf %86, %91 : vector<8x256xf32>
    %cst_29 = arith.constant 0xFF800000 : f32
    %93 = vector.broadcast %cst_29 : f32 to vector<8x2xf32>
    %94 = vector.extract_strided_slice %74 {offsets = [0, 0], sizes = [8, 254], strides = [1, 1]} : vector<8x256xf32> to vector<8x254xf32>
    %95 = tpu.concatenate %93, %94 in 1 : vector<8x2xf32>, vector<8x254xf32> -> vector<8x256xf32>
    %cst_30 = arith.constant 0xFF800000 : f32
    %96 = vector.broadcast %cst_30 : f32 to vector<8x256xf32>
    %97 = arith.select %34, %95, %96 : vector<8x256xi1>, vector<8x256xf32>
    %98 = arith.maximumf %92, %97 : vector<8x256xf32>
    %cst_31 = arith.constant 0xFF800000 : f32
    %99 = vector.broadcast %cst_31 : f32 to vector<8x16xf32>
    %100 = vector.extract_strided_slice %98 {offsets = [0, 16], sizes = [8, 240], strides = [1, 1]} : vector<8x256xf32> to vector<8x240xf32>
    %101 = tpu.concatenate %100, %99 in 1 : vector<8x240xf32>, vector<8x16xf32> -> vector<8x256xf32>
    %102 = arith.maximumf %98, %101 : vector<8x256xf32>
    %cst_32 = arith.constant 0xFF800000 : f32
    %103 = vector.broadcast %cst_32 : f32 to vector<8x16xf32>
    %104 = vector.extract_strided_slice %98 {offsets = [0, 0], sizes = [8, 240], strides = [1, 1]} : vector<8x256xf32> to vector<8x240xf32>
    %105 = tpu.concatenate %103, %104 in 1 : vector<8x16xf32>, vector<8x240xf32> -> vector<8x256xf32>
    %106 = arith.maximumf %102, %105 : vector<8x256xf32>
    %cst_33 = arith.constant 0xFF800000 : f32
    %107 = vector.broadcast %cst_33 : f32 to vector<8x32xf32>
    %108 = vector.extract_strided_slice %98 {offsets = [0, 32], sizes = [8, 224], strides = [1, 1]} : vector<8x256xf32> to vector<8x224xf32>
    %109 = tpu.concatenate %108, %107 in 1 : vector<8x224xf32>, vector<8x32xf32> -> vector<8x256xf32>
    %110 = arith.maximumf %106, %109 : vector<8x256xf32>
    %cst_34 = arith.constant 0xFF800000 : f32
    %111 = vector.broadcast %cst_34 : f32 to vector<8x32xf32>
    %112 = vector.extract_strided_slice %98 {offsets = [0, 0], sizes = [8, 224], strides = [1, 1]} : vector<8x256xf32> to vector<8x224xf32>
    %113 = tpu.concatenate %111, %112 in 1 : vector<8x32xf32>, vector<8x224xf32> -> vector<8x256xf32>
    %114 = arith.maximumf %110, %113 : vector<8x256xf32>
    %cst_35 = arith.constant 0xFF800000 : f32
    %115 = vector.broadcast %cst_35 : f32 to vector<8x1xf32>
    %116 = vector.extract_strided_slice %114 {offsets = [0, 1], sizes = [8, 255], strides = [1, 1]} : vector<8x256xf32> to vector<8x255xf32>
    %117 = tpu.concatenate %116, %115 in 1 : vector<8x255xf32>, vector<8x1xf32> -> vector<8x256xf32>
    %cst_36 = arith.constant 0xFF800000 : f32
    %118 = vector.broadcast %cst_36 : f32 to vector<8x256xf32>
    %119 = arith.select %28, %117, %118 : vector<8x256xi1>, vector<8x256xf32>
    %120 = arith.maximumf %114, %119 : vector<8x256xf32>
    %cst_37 = arith.constant 0xFF800000 : f32
    %121 = vector.broadcast %cst_37 : f32 to vector<8x1xf32>
    %122 = vector.extract_strided_slice %114 {offsets = [0, 0], sizes = [8, 255], strides = [1, 1]} : vector<8x256xf32> to vector<8x255xf32>
    %123 = tpu.concatenate %121, %122 in 1 : vector<8x1xf32>, vector<8x255xf32> -> vector<8x256xf32>
    %cst_38 = arith.constant 0xFF800000 : f32
    %124 = vector.broadcast %cst_38 : f32 to vector<8x256xf32>
    %125 = arith.select %32, %123, %124 : vector<8x256xi1>, vector<8x256xf32>
    %126 = arith.maximumf %120, %125 : vector<8x256xf32>
    %cst_39 = arith.constant 0xFF800000 : f32
    %127 = vector.broadcast %cst_39 : f32 to vector<8x2xf32>
    %128 = vector.extract_strided_slice %114 {offsets = [0, 2], sizes = [8, 254], strides = [1, 1]} : vector<8x256xf32> to vector<8x254xf32>
    %129 = tpu.concatenate %128, %127 in 1 : vector<8x254xf32>, vector<8x2xf32> -> vector<8x256xf32>
    %cst_40 = arith.constant 0xFF800000 : f32
    %130 = vector.broadcast %cst_40 : f32 to vector<8x256xf32>
    %131 = arith.select %30, %129, %130 : vector<8x256xi1>, vector<8x256xf32>
    %132 = arith.maximumf %126, %131 : vector<8x256xf32>
    %cst_41 = arith.constant 0xFF800000 : f32
    %133 = vector.broadcast %cst_41 : f32 to vector<8x2xf32>
    %134 = vector.extract_strided_slice %114 {offsets = [0, 0], sizes = [8, 254], strides = [1, 1]} : vector<8x256xf32> to vector<8x254xf32>
    %135 = tpu.concatenate %133, %134 in 1 : vector<8x2xf32>, vector<8x254xf32> -> vector<8x256xf32>
    %cst_42 = arith.constant 0xFF800000 : f32
    %136 = vector.broadcast %cst_42 : f32 to vector<8x256xf32>
    %137 = arith.select %34, %135, %136 : vector<8x256xi1>, vector<8x256xf32>
    %138 = arith.maximumf %132, %137 : vector<8x256xf32>
    %cst_43 = arith.constant 0xFF800000 : f32
    %139 = vector.broadcast %cst_43 : f32 to vector<8x16xf32>
    %140 = vector.extract_strided_slice %138 {offsets = [0, 16], sizes = [8, 240], strides = [1, 1]} : vector<8x256xf32> to vector<8x240xf32>
    %141 = tpu.concatenate %140, %139 in 1 : vector<8x240xf32>, vector<8x16xf32> -> vector<8x256xf32>
    %142 = arith.maximumf %138, %141 : vector<8x256xf32>
    %cst_44 = arith.constant 0xFF800000 : f32
    %143 = vector.broadcast %cst_44 : f32 to vector<8x16xf32>
    %144 = vector.extract_strided_slice %138 {offsets = [0, 0], sizes = [8, 240], strides = [1, 1]} : vector<8x256xf32> to vector<8x240xf32>
    %145 = tpu.concatenate %143, %144 in 1 : vector<8x16xf32>, vector<8x240xf32> -> vector<8x256xf32>
    %146 = arith.maximumf %142, %145 : vector<8x256xf32>
    %cst_45 = arith.constant 0xFF800000 : f32
    %147 = vector.broadcast %cst_45 : f32 to vector<8x32xf32>
    %148 = vector.extract_strided_slice %138 {offsets = [0, 32], sizes = [8, 224], strides = [1, 1]} : vector<8x256xf32> to vector<8x224xf32>
    %149 = tpu.concatenate %148, %147 in 1 : vector<8x224xf32>, vector<8x32xf32> -> vector<8x256xf32>
    %150 = arith.maximumf %146, %149 : vector<8x256xf32>
    %cst_46 = arith.constant 0xFF800000 : f32
    %151 = vector.broadcast %cst_46 : f32 to vector<8x32xf32>
    %152 = vector.extract_strided_slice %138 {offsets = [0, 0], sizes = [8, 224], strides = [1, 1]} : vector<8x256xf32> to vector<8x224xf32>
    %153 = tpu.concatenate %151, %152 in 1 : vector<8x32xf32>, vector<8x224xf32> -> vector<8x256xf32>
    %154 = arith.maximumf %150, %153 : vector<8x256xf32>
    %c0_47 = arith.constant 0 : index
    %c0_48 = arith.constant 0 : index
    %155 = vector.load %arg4[%c0_47, %c0_48] : memref<32x8xbf16, #tpu.memory_space<vmem>>, vector<32x8xbf16>
    %156 = arith.truncf %9 : vector<8x256xf32> to vector<8x256xbf16>
    %cst_49 = arith.constant dense<0.000000e+00> : vector<32x256xf32>
    %157 = tpu.matmul %155, %156, %cst_49 {dimension_numbers = #tpu.dot_dimension_numbers<[1], [0], [0], [1], [0, 0, 1, 1], [], []>} : vector<32x8xbf16>, vector<8x256xbf16>, vector<32x256xf32> -> vector<32x256xf32>
    %c0_50 = arith.constant 0 : index
    %c0_51 = arith.constant 0 : index
    %158 = vector.load %arg5[%c0_50, %c0_51] : memref<32x8xbf16, #tpu.memory_space<vmem>>, vector<32x8xbf16>
    %159 = arith.truncf %74 : vector<8x256xf32> to vector<8x256xbf16>
    %cst_52 = arith.constant dense<0.000000e+00> : vector<32x256xf32>
    %160 = tpu.matmul %158, %159, %cst_52 {dimension_numbers = #tpu.dot_dimension_numbers<[1], [0], [0], [1], [0, 0, 1, 1], [], []>} : vector<32x8xbf16>, vector<8x256xbf16>, vector<32x256xf32> -> vector<32x256xf32>
    %161 = arith.addf %157, %160 : vector<32x256xf32>
    %c0_53 = arith.constant 0 : index
    %c0_54 = arith.constant 0 : index
    %162 = vector.load %arg6[%c0_53, %c0_54] : memref<32x8xbf16, #tpu.memory_space<vmem>>, vector<32x8xbf16>
    %163 = arith.truncf %114 : vector<8x256xf32> to vector<8x256xbf16>
    %cst_55 = arith.constant dense<0.000000e+00> : vector<32x256xf32>
    %164 = tpu.matmul %162, %163, %cst_55 {dimension_numbers = #tpu.dot_dimension_numbers<[1], [0], [0], [1], [0, 0, 1, 1], [], []>} : vector<32x8xbf16>, vector<8x256xbf16>, vector<32x256xf32> -> vector<32x256xf32>
    %165 = arith.addf %161, %164 : vector<32x256xf32>
    %c0_56 = arith.constant 0 : index
    %c0_57 = arith.constant 0 : index
    %166 = vector.load %arg7[%c0_56, %c0_57] : memref<32x8xbf16, #tpu.memory_space<vmem>>, vector<32x8xbf16>
    %167 = arith.truncf %154 : vector<8x256xf32> to vector<8x256xbf16>
    %cst_58 = arith.constant dense<0.000000e+00> : vector<32x256xf32>
    %168 = tpu.matmul %166, %167, %cst_58 {dimension_numbers = #tpu.dot_dimension_numbers<[1], [0], [0], [1], [0, 0, 1, 1], [], []>} : vector<32x8xbf16>, vector<8x256xbf16>, vector<32x256xf32> -> vector<32x256xf32>
    %169 = arith.addf %165, %168 : vector<32x256xf32>
    %c0_59 = arith.constant 0 : index
    %c0_60 = arith.constant 0 : index
    %170 = vector.load %arg8[%c0_59, %c0_60] : memref<32x1xf32, #tpu.memory_space<vmem>>, vector<32x1xf32>
    %171 = vector.broadcast %170 : vector<32x1xf32> to vector<32x256xf32>
    %172 = arith.addf %169, %171 : vector<32x256xf32>
    %cst_61 = arith.constant 0.000000e+00 : f32
    %173 = vector.broadcast %cst_61 : f32 to vector<32x256xf32>
    %174 = arith.maximumf %172, %173 : vector<32x256xf32>
    %c0_62 = arith.constant 0 : index
    %c0_63 = arith.constant 0 : index
    %c0_64 = arith.constant 0 : index
    %175 = vector.load %arg9[%c0_62, %c0_63, %c0_64] : memref<1x32x256xf32, #tpu.memory_space<vmem>>, vector<1x32x256xf32>
    %176 = vector.shape_cast %175 : vector<1x32x256xf32> to vector<32x256xf32>
    %177 = vector.shape_cast %174 : vector<32x256xf32> to vector<1x32x256xf32>
    tpu.vector_store %arg9[%c0_62, %c0_63, %c0_64], %177 {strides = array<i32>} : memref<1x32x256xf32, #tpu.memory_space<vmem>>, vector<1x32x256xf32>,
    return
  }
  func.func @transform_0(%arg0: i32) -> (i32, i32, i32) {
    %c0_i32 = arith.constant 0 : i32
    %c0_i32_0 = arith.constant 0 : i32
    %c0_i32_1 = arith.constant 0 : i32
    return %arg0, %c0_i32, %c0_i32_0 : i32, i32, i32
  }
  func.func @transform_1(%arg0: i32) -> (i32, i32) {
    %c0_i32 = arith.constant 0 : i32
    %c0_i32_0 = arith.constant 0 : i32
    %c0_i32_1 = arith.constant 0 : i32
    return %c0_i32, %c0_i32_0 : i32, i32
  }
  func.func @transform_2(%arg0: i32) -> (i32, i32) {
    %c0_i32 = arith.constant 0 : i32
    %c0_i32_0 = arith.constant 0 : i32
    %c0_i32_1 = arith.constant 0 : i32
    return %c0_i32, %c0_i32_0 : i32, i32
  }
  func.func @transform_3(%arg0: i32) -> (i32, i32) {
    %c0_i32 = arith.constant 0 : i32
    %c0_i32_0 = arith.constant 0 : i32
    %c0_i32_1 = arith.constant 0 : i32
    return %c0_i32, %c0_i32_0 : i32, i32
  }
  func.func @transform_4(%arg0: i32) -> (i32, i32) {
    %c0_i32 = arith.constant 0 : i32
    %c0_i32_0 = arith.constant 0 : i32
    %c0_i32_1 = arith.constant 0 : i32
    return %c0_i32, %c0_i32_0 : i32, i32
  }
  func.func @transform_5(%arg0: i32) -> (i32, i32) {
    %c0_i32 = arith.constant 0 : i32
    %c0_i32_0 = arith.constant 0 : i32
    %c0_i32_1 = arith.constant 0 : i32
    return %c0_i32, %c0_i32_0 : i32, i32
  }
  func.func @transform_6(%arg0: i32) -> (i32, i32) {
    %c0_i32 = arith.constant 0 : i32
    %c0_i32_0 = arith.constant 0 : i32
    %c0_i32_1 = arith.constant 0 : i32
    return %c0_i32, %c0_i32_0 : i32, i32
  }
  func.func @transform_7(%arg0: i32) -> (i32, i32) {
    %c0_i32 = arith.constant 0 : i32
    %c0_i32_0 = arith.constant 0 : i32
    %c0_i32_1 = arith.constant 0 : i32
    return %c0_i32, %c0_i32_0 : i32, i32
  }
  func.func @transform_8(%arg0: i32) -> (i32, i32, i32) {
    %c0_i32 = arith.constant 0 : i32
    %c0_i32_0 = arith.constant 0 : i32
    %c0_i32_1 = arith.constant 0 : i32
    return %arg0, %c0_i32, %c0_i32_0 : i32, i32, i32
  }
}

</mosaic_0001>

<llo_original>
// kernel: sim_sppf_forward.1
$region0: #{sim_sppf_forward.1}
  #allocation0 [shape = 'u32[]', space=smem, size = 0x4, offset = 0x4, fixed_abs, tag = 'smem constant byte address 0x4 - core index']
  #allocation1 [shape = 'u32[144,128]{1,0:T(1,128)}', space=vmem, size = 0x12000, scoped, tag = 'internal scratch']
  %s0 = inlined_call_operand.vmem [shape: f32[2,16,256], index: 0, kind: input, shape index: {}]
  %s1 = inlined_call_operand.vmem [shape: bf16[8,16], index: 1, kind: input, shape index: {}]
  %s2 = inlined_call_operand.vmem [shape: f32[8,1], index: 2, kind: input, shape index: {}]
  %s3 = inlined_call_operand.vmem [shape: bf16[32,8], index: 3, kind: input, shape index: {}]
  %s4 = inlined_call_operand.vmem [shape: bf16[32,8], index: 4, kind: input, shape index: {}]
  %s5 = inlined_call_operand.vmem [shape: bf16[32,8], index: 5, kind: input, shape index: {}]
  %s6 = inlined_call_operand.vmem [shape: bf16[32,8], index: 6, kind: input, shape index: {}]
  %s7 = inlined_call_operand.vmem [shape: f32[32,1], index: 7, kind: input, shape index: {}]
  %s8 = inlined_call_operand.vmem [shape: f32[2,32,256], index: 8, kind: output, shape index: {}]
  %s9 = sld [smem:[#allocation0]]
  $region65: #{sim_sppf_forward.1} parent=0
    _
  %s11 = ssub.s32 1, %s9
  %s12 = scalar_select 0, %s11, %s9
  loop: start=0, step=1, limit=4
  $region2: #{sim_sppf_forward.1} parent=0 // loop_pre_header
    _
  $region3: #{sim_sppf_forward.1} parent=0 // loop_header
    %s14 = sphi 0, %s18
    %p15 = scmp.ge.s32.totalorder %s14, 4
    %s24 = sphi 0, %s26
    %s27 = sphi 0, %s24
    %s28 = sphi 0, %s27
    %s44 = sphi 0, %s28
    %s48 = sphi 0, %s48
    %s50 = sphi 0, %s48
    %s51 = sphi 0, %s50
    %s65 = sphi 0, %s51
    %s69 = sphi 0, %s69
    %s71 = sphi 0, %s69
    %s72 = sphi 0, %s71
    %s86 = sphi 0, %s72
    %s90 = sphi 0, %s90
    %s92 = sphi 0, %s90
    %s93 = sphi 0, %s92
    %s107 = sphi 0, %s93
    %s111 = sphi 0, %s111
    %s113 = sphi 0, %s111
    %s114 = sphi 0, %s113
    %s128 = sphi 0, %s114
    %s132 = sphi 0, %s132
    %s134 = sphi 0, %s132
    %s135 = sphi 0, %s134
    %s149 = sphi 0, %s135
    %s153 = sphi 0, %s153
    %s155 = sphi 0, %s153
    %s156 = sphi 0, %s155
    %s170 = sphi 0, %s156
    %s174 = sphi 0, %s174
    %s176 = sphi 0, %s174
    %s177 = sphi 0, %s176
    %s191 = sphi 0, %s177
    %s197 = sphi 0, %s199
    %s200 = sphi 0, %s197
    %s201 = sphi 0, %s200
    %s217 = sphi 0, %s201
  $region4: #{sim_sppf_forward.1} parent=0 // loop_header_branch
    %17 = sbr.rel (%p15) target = $region8
  $region5: #{sim_sppf_forward.1} parent=0 // loop_body
    %s19 = ssub.s32 %s14, 1
    %s20 = ssub.s32 %s14, 2
    %s21 = sadd.s32 %s14, 1
    %s22 = ssub.s32 %s14, %s21
    %p23 = scmp.eq.s32.totalorder %s22, 0
    %s25 = sadd.s32 %s24, 1
    %s26 = scalar_select %p23, %s24, %s25
    %p29 = pneg %p23
    %p30 = scmp.eq.s32.totalorder %s14, 1
    %p31 = por %p29, %p30
    %p32 = scmp.ne.s32.totalorder %s24, %s27
    %p33 = scmp.eq.s32.totalorder %s14, 0
    %p34 = por %p32, %p33
    %p35 = scmp.ne.s32.totalorder %s24, %s27
    %p36 = scmp.eq.s32.totalorder %s19, 1
    %p37 = por %p35, %p36
    %p38 = scmp.ne.s32.totalorder %s27, %s28
    %p39 = scmp.eq.s32.totalorder %s19, 0
    %p40 = por %p38, %p39
    %p41 = scmp.ne.s32.totalorder %s27, %s28
    %p42 = scmp.eq.s32.totalorder %s20, 1
    %p43 = por %p41, %p42
    %p45 = scmp.ne.s32.totalorder %s28, %s44
    %p46 = scmp.eq.s32.totalorder %s20, 0
    %p47 = por %p45, %p46
    %s49 = sadd.s32 %s48, 1
    %p52 = scmp.eq.s32.totalorder %s14, 1
    %p53 = scmp.ne.s32.totalorder %s48, %s50
    %p54 = scmp.eq.s32.totalorder %s14, 0
    %p55 = por %p53, %p54
    %p56 = scmp.ne.s32.totalorder %s48, %s50
    %p57 = scmp.eq.s32.totalorder %s19, 1
    %p58 = por %p56, %p57
    %p59 = scmp.ne.s32.totalorder %s50, %s51
    %p60 = scmp.eq.s32.totalorder %s19, 0
    %p61 = por %p59, %p60
    %p62 = scmp.ne.s32.totalorder %s50, %s51
    %p63 = scmp.eq.s32.totalorder %s20, 1
    %p64 = por %p62, %p63
    %p66 = scmp.ne.s32.totalorder %s51, %s65
    %p67 = scmp.eq.s32.totalorder %s20, 0
    %p68 = por %p66, %p67
    %s70 = sadd.s32 %s69, 1
    %p73 = scmp.eq.s32.totalorder %s14, 1
    %p74 = scmp.ne.s32.totalorder %s69, %s71
    %p75 = scmp.eq.s32.totalorder %s14, 0
    %p76 = por %p74, %p75
    %p77 = scmp.ne.s32.totalorder %s69, %s71
    %p78 = scmp.eq.s32.totalorder %s19, 1
    %p79 = por %p77, %p78
    %p80 = scmp.ne.s32.totalorder %s71, %s72
    %p81 = scmp.eq.s32.totalorder %s19, 0
    %p82 = por %p80, %p81
    %p83 = scmp.ne.s32.totalorder %s71, %s72
    %p84 = scmp.eq.s32.totalorder %s20, 1
    %p85 = por %p83, %p84
    %p87 = scmp.ne.s32.totalorder %s72, %s86
    %p88 = scmp.eq.s32.totalorder %s20, 0
    %p89 = por %p87, %p88
    %s91 = sadd.s32 %s90, 1
    %p94 = scmp.eq.s32.totalorder %s14, 1
    %p95 = scmp.ne.s32.totalorder %s90, %s92
    %p96 = scmp.eq.s32.totalorder %s14, 0
    %p97 = por %p95, %p96
    %p98 = scmp.ne.s32.totalorder %s90, %s92
    %p99 = scmp.eq.s32.totalorder %s19, 1
    %p100 = por %p98, %p99
    %p101 = scmp.ne.s32.totalorder %s92, %s93
    %p102 = scmp.eq.s32.totalorder %s19, 0
    %p103 = por %p101, %p102
    %p104 = scmp.ne.s32.totalorder %s92, %s93
    %p105 = scmp.eq.s32.totalorder %s20, 1
    %p106 = por %p104, %p105
    %p108 = scmp.ne.s32.totalorder %s93, %s107
    %p109 = scmp.eq.s32.totalorder %s20, 0
    %p110 = por %p108, %p109
    %s112 = sadd.s32 %s111, 1
    %p115 = scmp.eq.s32.totalorder %s14, 1
    %p116 = scmp.ne.s32.totalorder %s111, %s113
    %p117 = scmp.eq.s32.totalorder %s14, 0
    %p118 = por %p116, %p117
    %p119 = scmp.ne.s32.totalorder %s111, %s113
    %p120 = scmp.eq.s32.totalorder %s19, 1
    %p121 = por %p119, %p120
    %p122 = scmp.ne.s32.totalorder %s113, %s114
    %p123 = scmp.eq.s32.totalorder %s19, 0
    %p124 = por %p122, %p123
    %p125 = scmp.ne.s32.totalorder %s113, %s114
    %p126 = scmp.eq.s32.totalorder %s20, 1
    %p127 = por %p125, %p126
    %p129 = scmp.ne.s32.totalorder %s114, %s128
    %p130 = scmp.eq.s32.totalorder %s20, 0
    %p131 = por %p129, %p130
    %s133 = sadd.s32 %s132, 1
    %p136 = scmp.eq.s32.totalorder %s14, 1
    %p137 = scmp.ne.s32.totalorder %s132, %s134
    %p138 = scmp.eq.s32.totalorder %s14, 0
    %p139 = por %p137, %p138
    %p140 = scmp.ne.s32.totalorder %s132, %s134
    %p141 = scmp.eq.s32.totalorder %s19, 1
    %p142 = por %p140, %p141
    %p143 = scmp.ne.s32.totalorder %s134, %s135
    %p144 = scmp.eq.s32.totalorder %s19, 0
    %p145 = por %p143, %p144
    %p146 = scmp.ne.s32.totalorder %s134, %s135
    %p147 = scmp.eq.s32.totalorder %s20, 1
    %p148 = por %p146, %p147
    %p150 = scmp.ne.s32.totalorder %s135, %s149
    %p151 = scmp.eq.s32.totalorder %s20, 0
    %p152 = por %p150, %p151
    %s154 = sadd.s32 %s153, 1
    %p157 = scmp.eq.s32.totalorder %s14, 1
    %p158 = scmp.ne.s32.totalorder %s153, %s155
    %p159 = scmp.eq.s32.totalorder %s14, 0
    %p160 = por %p158, %p159
    %p161 = scmp.ne.s32.totalorder %s153, %s155
    %p162 = scmp.eq.s32.totalorder %s19, 1
    %p163 = por %p161, %p162
    %p164 = scmp.ne.s32.totalorder %s155, %s156
    %p165 = scmp.eq.s32.totalorder %s19, 0
    %p166 = por %p164, %p165
    %p167 = scmp.ne.s32.totalorder %s155, %s156
    %p168 = scmp.eq.s32.totalorder %s20, 1
    %p169 = por %p167, %p168
    %p171 = scmp.ne.s32.totalorder %s156, %s170
    %p172 = scmp.eq.s32.totalorder %s20, 0
    %p173 = por %p171, %p172
    %s175 = sadd.s32 %s174, 1
    %p178 = scmp.eq.s32.totalorder %s14, 1
    %p179 = scmp.ne.s32.totalorder %s174, %s176
    %p180 = scmp.eq.s32.totalorder %s14, 0
    %p181 = por %p179, %p180
    %p182 = scmp.ne.s32.totalorder %s174, %s176
    %p183 = scmp.eq.s32.totalorder %s19, 1
    %p184 = por %p182, %p183
    %p185 = scmp.ne.s32.totalorder %s176, %s177
    %p186 = scmp.eq.s32.totalorder %s19, 0
    %p187 = por %p185, %p186
    %p188 = scmp.ne.s32.totalorder %s176, %s177
    %p189 = scmp.eq.s32.totalorder %s20, 1
    %p190 = por %p188, %p189
    %p192 = scmp.ne.s32.totalorder %s177, %s191
    %p193 = scmp.eq.s32.totalorder %s20, 0
    %p194 = por %p192, %p193
    %s195 = ssub.s32 %s14, %s21
    %p196 = scmp.eq.s32.totalorder %s195, 0
    %s198 = sadd.s32 %s197, 1
    %s199 = scalar_select %p196, %s197, %s198
    %p202 = pneg %p196
    %p203 = scmp.eq.s32.totalorder %s14, 1
    %p204 = por %p202, %p203
    %p205 = scmp.ne.s32.totalorder %s197, %s200
    %p206 = scmp.eq.s32.totalorder %s14, 0
    %p207 = por %p205, %p206
    %p208 = scmp.ne.s32.totalorder %s197, %s200
    %p209 = scmp.eq.s32.totalorder %s19, 1
    %p210 = por %p208, %p209
    %p211 = scmp.ne.s32.totalorder %s200, %s201
    %p212 = scmp.eq.s32.totalorder %s19, 0
    %p213 = por %p211, %p212
    %p214 = scmp.ne.s32.totalorder %s200, %s201
    %p215 = scmp.eq.s32.totalorder %s20, 1
    %p216 = por %p214, %p215
    %p218 = scmp.ne.s32.totalorder %s201, %s217
    %p219 = scmp.eq.s32.totalorder %s20, 0
    %p220 = por %p218, %p219
    %p221 = scmp.le.s32.totalorder 1, %s14
    %p222 = scmp.lt.s32.totalorder %s14, 3
    %p223 = pnand %p221, %p222
    %p224 = pneg %p223
    // Predicated region
    $region9: #{sim_sppf_forward.1} parent=5 // pred_check
      _
    $region10: #{sim_sppf_forward.1} parent=5 // pred_check_branch
      %226 = sbr.rel (%p223) target = $region12
    $region11: #{sim_sppf_forward.1} parent=5 // pred_region
      %s227 = ssub.s32 %s14, 1
      // Predicated region
      $region13: #{sim_sppf_forward.1} parent=11 // pred_check
        %p228 = pneg %p61
      $region14: #{sim_sppf_forward.1} parent=11 // pred_check_branch
        %230 = sbr.rel (%p228) target = $region16
      $region15: #{sim_sppf_forward.1} parent=11 // pred_region
        _
      $region16: #{sim_sppf_forward.1} parent=11 // pred_fallthru
        _
      // Predicated region
      $region17: #{sim_sppf_forward.1} parent=11 // pred_check
        %p231 = pneg %p82
      $region18: #{sim_sppf_forward.1} parent=11 // pred_check_branch
        %233 = sbr.rel (%p231) target = $region20
      $region19: #{sim_sppf_forward.1} parent=11 // pred_region
        _
      $region20: #{sim_sppf_forward.1} parent=11 // pred_fallthru
        _
      // Predicated region
      $region21: #{sim_sppf_forward.1} parent=11 // pred_check
        %p234 = pneg %p103
      $region22: #{sim_sppf_forward.1} parent=11 // pred_check_branch
        %236 = sbr.rel (%p234) target = $region24
      $region23: #{sim_sppf_forward.1} parent=11 // pred_region
        _
      $region24: #{sim_sppf_forward.1} parent=11 // pred_fallthru
        _
      // Predicated region
      $region25: #{sim_sppf_forward.1} parent=11 // pred_check
        %p237 = pneg %p124
      $region26: #{sim_sppf_forward.1} parent=11 // pred_check_branch
        %239 = sbr.rel (%p237) target = $region28
      $region27: #{sim_sppf_forward.1} parent=11 // pred_region
        _
      $region28: #{sim_sppf_forward.1} parent=11 // pred_fallthru
        _
      // Predicated region
      $region29: #{sim_sppf_forward.1} parent=11 // pred_check
        %p240 = pneg %p145
      $region30: #{sim_sppf_forward.1} parent=11 // pred_check_branch
        %242 = sbr.rel (%p240) target = $region32
      $region31: #{sim_sppf_forward.1} parent=11 // pred_region
        _
      $region32: #{sim_sppf_forward.1} parent=11 // pred_fallthru
        _
      // Predicated region
      $region33: #{sim_sppf_forward.1} parent=11 // pred_check
        %p243 = pneg %p166
      $region34: #{sim_sppf_forward.1} parent=11 // pred_check_branch
        %245 = sbr.rel (%p243) target = $region36
      $region35: #{sim_sppf_forward.1} parent=11 // pred_region
        _
      $region36: #{sim_sppf_forward.1} parent=11 // pred_fallthru
        _
      // Predicated region
      $region37: #{sim_sppf_forward.1} parent=11 // pred_check
        %p246 = pneg %p187
      $region38: #{sim_sppf_forward.1} parent=11 // pred_check_branch
        %248 = sbr.rel (%p246) target = $region40
      $region39: #{sim_sppf_forward.1} parent=11 // pred_region
        _
      $region40: #{sim_sppf_forward.1} parent=11 // pred_fallthru
        _
    $region12: #{sim_sppf_forward.1} parent=5 // pred_fallthru
      _
    %p249 = scmp.lt.s32.totalorder %s14, 2
    // Predicated region
    $region41: #{sim_sppf_forward.1} parent=5 // pred_check
      %p250 = pneg %p249
    $region42: #{sim_sppf_forward.1} parent=5 // pred_check_branch
      %252 = sbr.rel (%p250) target = $region44
    $region43: #{sim_sppf_forward.1} parent=5 // pred_region
      // Predicated region
      $region45: #{sim_sppf_forward.1} parent=43 // pred_check
        %p253 = pneg %p34
      $region46: #{sim_sppf_forward.1} parent=43 // pred_check_branch
        %255 = sbr.rel (%p253) target = $region48
      $region47: #{sim_sppf_forward.1} parent=43 // pred_region
        %p256 = scmp.lt.s32.totalorder %s14, 1
        %s257 = scalar_select %p256, %s14, 1
        %s258 = smul.addr %s257, 4
        %s259 = smul.addr %s258, 8
        %s260 = scalar_lea.vmem %s0, %s259
      $region48: #{sim_sppf_forward.1} parent=43 // pred_fallthru
        _
    $region44: #{sim_sppf_forward.1} parent=5 // pred_fallthru
      _
    %p261 = scmp.le.s32.totalorder 1, %s14
    %p262 = scmp.lt.s32.totalorder %s14, 3
    %p263 = pnand %p261, %p262
    %p264 = pneg %p263
    // Predicated region
    $region49: #{sim_sppf_forward.1} parent=5 // pred_check
      _
    $region50: #{sim_sppf_forward.1} parent=5 // pred_check_branch
      %266 = sbr.rel (%p263) target = $region52
    $region51: #{sim_sppf_forward.1} parent=5 // pred_region
      %s267 = ssub.s32 %s14, 1
      %p268 = scmp.lt.s32.totalorder %s19, 1
      %s269 = scalar_select %p268, %s19, 1
      %s270 = smul.addr %s269, 4
      %s271 = smul.addr %s270, 8
      %s272 = scalar_lea.vmem %s0, %s271
      %p273 = pneg %p40
      %p274 = pneg %p37
      %p275 = pneg %p61
      %p276 = pneg %p58
      %p277 = pneg %p82
      %p278 = pneg %p79
      %p279 = pneg %p103
      %p280 = pneg %p100
      %p281 = pneg %p124
      %p282 = pneg %p121
      %p283 = pneg %p145
      %p284 = pneg %p142
      %p285 = pneg %p166
      %p286 = pneg %p163
      %p287 = pneg %p187
      %p288 = pneg %p184
      %p289 = pneg %p213
      %p290 = pneg %p210
      %p291 = scmp.lt.s32.totalorder %s19, 1
      %s292 = scalar_select %p291, %s19, 1
      %s293 = smul.addr %s292, 8
      %s294 = smul.addr %s293, 8
      %s295 = scalar_lea.vmem %s8, %s294
      %p296 = scmp.lt.s32.totalorder %s19, 1
      %s297 = scalar_select %p296, %s19, 1
      %s298 = smul.addr %s297, 4
      %s299 = smul.addr %s298, 8
      %s300 = scalar_lea.vmem %s0, %s299
      %p301 = scmp.lt.s32.totalorder %s19, 1
      %s302 = scalar_select %p301, %s19, 1
      %s303 = smul.addr %s302, 8
      %s304 = smul.addr %s303, 8
      %s305 = scalar_lea.vmem %s8, %s304
      %v307 = vld [vmem:[%s300] sm:$0xff]
      %v308 = vld [vmem:[%s300 + $0x8] sm:$0xff]
      %v309 = vld [vmem:[%s300 + $0x10] sm:$0xff]
      %v310 = vld [vmem:[%s300 + $0x18] sm:$0xff]
      %v311 = vpack.c.bf16 %v309, %v307
      %v312 = vpack.c.bf16 %v310, %v308
      %v313 = vld [vmem:[%s1] sm:$0xf]
      %v314 = vld [vmem:[%s2] sm:$0xff]
      %316 = vset.pattern.permute.xlu0 0
      %317 = vperm.xlu0 %316, %v314
      %v318 = vpop.permute.xlu0 %317
      %vm320 = vcmask 130048
      %v322 = vsel %vm320, %v313, 0
      %324 = vmatprep.subr.bf16.mxu0 %v312
      %325 = vmatpush1.bf16.msra.mxu0 %v311
      %326 = vmatprep.subr.bf16.mxu0 0
      %327 = vmatpush1.bf16.msra.mxu0 0
      %328 = vmatprep.subr.bf16.mxu0 0
      %329 = vmatpush1.bf16.msra.mxu0 0
      %330 = vmatprep.subr.bf16.mxu0 0
      %331 = vmatpush1.bf16.msra.mxu0 0
      %332 = vmatprep.subr.bf16.mxu0 0
      %333 = vmatpush1.bf16.msra.mxu0 0
      %334 = vmatprep.subr.bf16.mxu0 0
      %335 = vmatpush1.bf16.msra.mxu0 0
      %336 = vmatprep.subr.bf16.mxu0 0
      %337 = vmatpush1.bf16.msra.mxu0 0
      %338 = vmatprep.subr.bf16.mxu0 0
      %339 = vmatpush1.bf16.msra.mxu0 0
      %340 = vmatprep.subr.bf16.mxu0 0
      %341 = vmatpush1.bf16.msra.mxu0 0
      %342 = vmatprep.subr.bf16.mxu0 0
      %343 = vmatpush1.bf16.msra.mxu0 0
      %344 = vmatprep.subr.bf16.mxu0 0
      %345 = vmatpush1.bf16.msra.mxu0 0
      %346 = vmatprep.subr.bf16.mxu0 0
      %347 = vmatpush1.bf16.msra.mxu0 0
      %348 = vmatprep.subr.bf16.mxu0 0
      %349 = vmatpush1.bf16.msra.mxu0 0
      %350 = vmatprep.subr.bf16.mxu0 0
      %351 = vmatpush1.bf16.msra.mxu0 0
      %352 = vmatprep.subr.bf16.mxu0 0
      %353 = vmatpush1.bf16.msra.mxu0 0
      %354 = vmatprep.subr.bf16.mxu0 0
      %355 = vmatpush1.bf16.msra.mxu0 0
      %356 = vmatprep.mubr.bf16.mxu0 0
      %357 = vmatmul.mubr.bf16.gmra.mrb[0].mxu0 %v322
      %v358 = vpop.f32.mrb[0].mxu0
      %v359 = vadd.f32 %v318, %v358
      %v360 = vpop.f32.mrb[0].mxu0
      %v361 = vadd.f32 %v318, %v360
      %v362 = vpop.f32.mrb[0].mxu0
      %v363 = vpop.f32.mrb[0].mxu0
      %364 = vdwg.mxu0
      %v365 = vmax.f32 %v359, 0.0
      %v366 = vmax.f32 %v361, 0.0
      %v367 = vlaneseq
      %v368 = vand.u32 %v367, 127
      %v369 = vadd.s32 %v368, 128
      %vm370 = vcmp.lt.s32.totalorder %v368, 0
      %v371 = vsub.s32 0, %v368
      %v372 = vsel %vm370, %v371, %v368
      %v373 = vshrl.u32 %v372, 4
      %v374 = vand.u32 %v372, 15
      %v375 = vsub.s32 0, %v374
      %v376 = vsel %vm370, %v375, %v374
      %vm377 = vcmp.lt.s32.totalorder %v369, 0
      %v378 = vsub.s32 0, %v369
      %v379 = vsel %vm377, %v378, %v369
      %v380 = vshrl.u32 %v379, 4
      %v381 = vand.u32 %v379, 15
      %v382 = vsub.s32 0, %v381
      %v383 = vsel %vm377, %v382, %v381
      %vm384 = vcmp.ne.s32.totalorder %v376, 0
      %vm385 = vcmp.ne.s32.totalorder %v383, 0
      %vm386 = vcmp.lt.s32.totalorder %v376, 0
      %vm387 = vcmp.lt.s32.totalorder %v383, 0
      %vm388 = vmand %vm386, %vm384
      %vm389 = vmand %vm387, %vm385
      %v390 = vadd.s32 %v376, 16
      %v391 = vadd.s32 %v383, 16
      %v392 = vsel %vm388, %v390, %v376
      %v393 = vsel %vm389, %v391, %v383
      %vm394 = vcmp.lt.s32.totalorder %v392, 15
      %vm395 = vcmp.lt.s32.totalorder %v393, 15
      %vm396 = vcmp.lt.s32.totalorder %v392, 14
      %vm397 = vcmp.lt.s32.totalorder %v393, 14
      %vm398 = vcmp.ge.s32.totalorder %v392, 1
      %vm399 = vcmp.ge.s32.totalorder %v393, 1
      %vm400 = vcmp.ge.s32.totalorder %v392, 2
      %vm401 = vcmp.ge.s32.totalorder %v393, 2
      %404 = vrot.lane.b32.xlu0 %v365, 127
      %v405 = vpop.permute.xlu0 %404
      %406 = vrot.lane.b32.xlu0 %v366, 127
      %v407 = vpop.permute.xlu0 %406
      %vm408 = vcmask 1039360
      %v409 = vsel %vm408, %v405, %v407
      %v412 = vsel %vm408, %v407, -inf
      %v413 = vsel %vm394, %v409, -inf
      %v414 = vsel %vm395, %v412, -inf
      %v415 = vmax.f32 %v365, %v413
      %v416 = vmax.f32 %v366, %v414
      %417 = vrot.lane.b32.xlu0 %v365, 1
      %v418 = vpop.permute.xlu0 %417
      %419 = vrot.lane.b32.xlu0 %v366, 1
      %v420 = vpop.permute.xlu0 %419
      %vm421 = vcmask 7168
      %v422 = vsel %vm421, %v418, %v420
      %v425 = vsel %vm421, -inf, %v418
      %v426 = vsel %vm398, %v425, -inf
      %v427 = vsel %vm399, %v422, -inf
      %v428 = vmax.f32 %v415, %v426
      %v429 = vmax.f32 %v416, %v427
      %430 = vrot.lane.b32.xlu0 %v365, 126
      %v431 = vpop.permute.xlu0 %430
      %432 = vrot.lane.b32.xlu0 %v366, 126
      %v433 = vpop.permute.xlu0 %432
      %vm434 = vcmask 1031168
      %v435 = vsel %vm434, %v431, %v433
      %v438 = vsel %vm434, %v433, -inf
      %v439 = vsel %vm396, %v435, -inf
      %v440 = vsel %vm397, %v438, -inf
      %v441 = vmax.f32 %v428, %v439
      %v442 = vmax.f32 %v429, %v440
      %443 = vrot.lane.b32.xlu0 %v365, 2
      %v444 = vpop.permute.xlu0 %443
      %445 = vrot.lane.b32.xlu0 %v366, 2
      %v446 = vpop.permute.xlu0 %445
      %vm447 = vcmask 15360
      %v448 = vsel %vm447, %v444, %v446
      %v451 = vsel %vm447, -inf, %v444
      %v452 = vsel %vm400, %v451, -inf
      %v453 = vsel %vm401, %v448, -inf
      %v454 = vmax.f32 %v441, %v452
      %v455 = vmax.f32 %v442, %v453
      %458 = vrot.lane.b32.xlu0 %v454, 112
      %v459 = vpop.permute.xlu0 %458
      %460 = vrot.lane.b32.xlu0 %v455, 112
      %v461 = vpop.permute.xlu0 %460
      %vm462 = vcmask 916480
      %v463 = vsel %vm462, %v459, %v461
      %v466 = vsel %vm462, %v461, -inf
      %v467 = vmax.f32 %v454, %v463
      %v468 = vmax.f32 %v455, %v466
      %469 = vrot.lane.b32.xlu0 %v454, 16
      %v470 = vpop.permute.xlu0 %469
      %471 = vrot.lane.b32.xlu0 %v455, 16
      %v472 = vpop.permute.xlu0 %471
      %v473 = vsel %vm320, %v470, %v472
      %v476 = vsel %vm320, -inf, %v470
      %v477 = vmax.f32 %v467, %v476
      %v478 = vmax.f32 %v468, %v473
      %479 = vrot.lane.b32.xlu0 %v454, 96
      %v480 = vpop.permute.xlu0 %479
      %481 = vrot.lane.b32.xlu0 %v455, 96
      %v482 = vpop.permute.xlu0 %481
      %vm483 = vcmask 785408
      %v484 = vsel %vm483, %v480, %v482
      %v487 = vsel %vm483, %v482, -inf
      %v488 = vmax.f32 %v477, %v484
      %v489 = vmax.f32 %v478, %v487
      %490 = vrot.lane.b32.xlu0 %v454, 32
      %v491 = vpop.permute.xlu0 %490
      %492 = vrot.lane.b32.xlu0 %v455, 32
      %v493 = vpop.permute.xlu0 %492
      %vm494 = vcmask 261120
      %v495 = vsel %vm494, %v491, %v493
      %v498 = vsel %vm494, -inf, %v491
      %v499 = vmax.f32 %v488, %v498
      %v500 = vmax.f32 %v489, %v495
      %503 = vrot.lane.b32.xlu0 %v499, 127
      %v504 = vpop.permute.xlu0 %503
      %505 = vrot.lane.b32.xlu0 %v500, 127
      %v506 = vpop.permute.xlu0 %505
      %v507 = vsel %vm408, %v504, %v506
      %v510 = vsel %vm408, %v506, -inf
      %v511 = vsel %vm394, %v507, -inf
      %v512 = vsel %vm395, %v510, -inf
      %v513 = vmax.f32 %v499, %v511
      %v514 = vmax.f32 %v500, %v512
      %515 = vrot.lane.b32.xlu0 %v499, 1
      %v516 = vpop.permute.xlu0 %515
      %517 = vrot.lane.b32.xlu0 %v500, 1
      %v518 = vpop.permute.xlu0 %517
      %v519 = vsel %vm421, %v516, %v518
      %v522 = vsel %vm421, -inf, %v516
      %v523 = vsel %vm398, %v522, -inf
      %v524 = vsel %vm399, %v519, -inf
      %v525 = vmax.f32 %v513, %v523
      %v526 = vmax.f32 %v514, %v524
      %527 = vrot.lane.b32.xlu0 %v499, 126
      %v528 = vpop.permute.xlu0 %527
      %529 = vrot.lane.b32.xlu0 %v500, 126
      %v530 = vpop.permute.xlu0 %529
      %v531 = vsel %vm434, %v528, %v530
      %v534 = vsel %vm434, %v530, -inf
      %v535 = vsel %vm396, %v531, -inf
      %v536 = vsel %vm397, %v534, -inf
      %v537 = vmax.f32 %v525, %v535
      %v538 = vmax.f32 %v526, %v536
      %539 = vrot.lane.b32.xlu0 %v499, 2
      %v540 = vpop.permute.xlu0 %539
      %541 = vrot.lane.b32.xlu0 %v500, 2
      %v542 = vpop.permute.xlu0 %541
      %v543 = vsel %vm447, %v540, %v542
      %v546 = vsel %vm447, -inf, %v540
      %v547 = vsel %vm400, %v546, -inf
      %v548 = vsel %vm401, %v543, -inf
      %v549 = vmax.f32 %v537, %v547
      %v550 = vmax.f32 %v538, %v548
      %553 = vrot.lane.b32.xlu0 %v549, 112
      %v554 = vpop.permute.xlu0 %553
      %555 = vrot.lane.b32.xlu0 %v550, 112
      %v556 = vpop.permute.xlu0 %555
      %v557 = vsel %vm462, %v554, %v556
      %v560 = vsel %vm462, %v556, -inf
      %v561 = vmax.f32 %v549, %v557
      %v562 = vmax.f32 %v550, %v560
      %563 = vrot.lane.b32.xlu0 %v549, 16
      %v564 = vpop.permute.xlu0 %563
      %565 = vrot.lane.b32.xlu0 %v550, 16
      %v566 = vpop.permute.xlu0 %565
      %v567 = vsel %vm320, %v564, %v566
      %v570 = vsel %vm320, -inf, %v564
      %v571 = vmax.f32 %v561, %v570
      %v572 = vmax.f32 %v562, %v567
      %573 = vrot.lane.b32.xlu0 %v549, 96
      %v574 = vpop.permute.xlu0 %573
      %575 = vrot.lane.b32.xlu0 %v550, 96
      %v576 = vpop.permute.xlu0 %575
      %v577 = vsel %vm483, %v574, %v576
      %v580 = vsel %vm483, %v576, -inf
      %v581 = vmax.f32 %v571, %v577
      %v582 = vmax.f32 %v572, %v580
      %583 = vrot.lane.b32.xlu0 %v549, 32
      %v584 = vpop.permute.xlu0 %583
      %585 = vrot.lane.b32.xlu0 %v550, 32
      %v586 = vpop.permute.xlu0 %585
      %v587 = vsel %vm494, %v584, %v586
      %v590 = vsel %vm494, -inf, %v584
      %v591 = vmax.f32 %v581, %v590
      %v592 = vmax.f32 %v582, %v587
      %595 = vrot.lane.b32.xlu0 %v591, 127
      %v596 = vpop.permute.xlu0 %595
      %597 = vrot.lane.b32.xlu0 %v592, 127
      %v598 = vpop.permute.xlu0 %597
      %v599 = vsel %vm408, %v596, %v598
      %v602 = vsel %vm408, %v598, -inf
      %v603 = vsel %vm394, %v599, -inf
      %v604 = vsel %vm395, %v602, -inf
      %v605 = vmax.f32 %v591, %v603
      %v606 = vmax.f32 %v592, %v604
      %607 = vrot.lane.b32.xlu0 %v591, 1
      %v608 = vpop.permute.xlu0 %607
      %609 = vrot.lane.b32.xlu0 %v592, 1
      %v610 = vpop.permute.xlu0 %609
      %v611 = vsel %vm421, %v608, %v610
      %v614 = vsel %vm421, -inf, %v608
      %v615 = vsel %vm398, %v614, -inf
      %v616 = vsel %vm399, %v611, -inf
      %v617 = vmax.f32 %v605, %v615
      %v618 = vmax.f32 %v606, %v616
      %619 = vrot.lane.b32.xlu0 %v591, 126
      %v620 = vpop.permute.xlu0 %619
      %621 = vrot.lane.b32.xlu0 %v592, 126
      %v622 = vpop.permute.xlu0 %621
      %v623 = vsel %vm434, %v620, %v622
      %v626 = vsel %vm434, %v622, -inf
      %v627 = vsel %vm396, %v623, -inf
      %v628 = vsel %vm397, %v626, -inf
      %v629 = vmax.f32 %v617, %v627
      %v630 = vmax.f32 %v618, %v628
      %631 = vrot.lane.b32.xlu0 %v591, 2
      %v632 = vpop.permute.xlu0 %631
      %633 = vrot.lane.b32.xlu0 %v592, 2
      %v634 = vpop.permute.xlu0 %633
      %v635 = vsel %vm447, %v632, %v634
      %v638 = vsel %vm447, -inf, %v632
      %v639 = vsel %vm400, %v638, -inf
      %v640 = vsel %vm401, %v635, -inf
      %v641 = vmax.f32 %v629, %v639
      %v642 = vmax.f32 %v630, %v640
      %645 = vrot.lane.b32.xlu0 %v641, 112
      %v646 = vpop.permute.xlu0 %645
      %647 = vrot.lane.b32.xlu0 %v642, 112
      %v648 = vpop.permute.xlu0 %647
      %v649 = vsel %vm462, %v646, %v648
      %v652 = vsel %vm462, %v648, -inf
      %v653 = vmax.f32 %v641, %v649
      %v654 = vmax.f32 %v642, %v652
      %655 = vrot.lane.b32.xlu0 %v641, 16
      %v656 = vpop.permute.xlu0 %655
      %657 = vrot.lane.b32.xlu0 %v642, 16
      %v658 = vpop.permute.xlu0 %657
      %v659 = vsel %vm320, %v656, %v658
      %v662 = vsel %vm320, -inf, %v656
      %v663 = vmax.f32 %v653, %v662
      %v664 = vmax.f32 %v654, %v659
      %665 = vrot.lane.b32.xlu0 %v641, 96
      %v666 = vpop.permute.xlu0 %665
      %667 = vrot.lane.b32.xlu0 %v642, 96
      %v668 = vpop.permute.xlu0 %667
      %v669 = vsel %vm483, %v666, %v668
      %v672 = vsel %vm483, %v668, -inf
      %v673 = vmax.f32 %v663, %v669
      %v674 = vmax.f32 %v664, %v672
      %675 = vrot.lane.b32.xlu0 %v641, 32
      %v676 = vpop.permute.xlu0 %675
      %677 = vrot.lane.b32.xlu0 %v642, 32
      %v678 = vpop.permute.xlu0 %677
      %v679 = vsel %vm494, %v676, %v678
      %v682 = vsel %vm494, -inf, %v676
      %v683 = vmax.f32 %v673, %v682
      %v684 = vmax.f32 %v674, %v679
      %v685 = vld [vmem:[%s3] sm:$0xf]
      %v686 = vld [vmem:[%s3 + $0x4] sm:$0xf]
      %v687 = vld [vmem:[%s3 + $0x8] sm:$0xf]
      %v688 = vld [vmem:[%s3 + $0xc] sm:$0xf]
      %v689 = vpack.c.bf16 %v365, %v365
      %v690 = vpack.c.bf16 %v366, %v366
      %v691 = vld [vmem:[%s4] sm:$0xf]
      %v692 = vld [vmem:[%s4 + $0x4] sm:$0xf]
      %v693 = vld [vmem:[%s4 + $0x8] sm:$0xf]
      %v694 = vld [vmem:[%s4 + $0xc] sm:$0xf]
      %v695 = vpack.c.bf16 %v499, %v499
      %v696 = vpack.c.bf16 %v500, %v500
      %v701 = vunpack.c.l.b16 %v691
      %v702 = vunpack.c.l.b16 %v692
      %v703 = vunpack.c.l.b16 %v693
      %v704 = vunpack.c.l.b16 %v694
      %v705 = vpack.c.b16 %v702, %v701
      %v706 = vpack.c.b16 %v704, %v703
      %vm707 = vcmask 64512
      %v709 = vsel %vm707, %v705, 0
      %v712 = vsel %vm707, %v706, 0
      %vm714 = vcmask 1043456
      %v716 = vsel %vm714, %v695, 0
      %v719 = vsel %vm714, %v696, 0
      %721 = vmatprep.subr.bf16.mxu0 %v719
      %722 = vmatpush1.bf16.msra.mxu0 %v716
      %723 = vmatprep.subr.bf16.mxu0 0
      %724 = vmatpush1.bf16.msra.mxu0 0
      %725 = vmatprep.subr.bf16.mxu0 0
      %726 = vmatpush1.bf16.msra.mxu0 0
      %727 = vmatprep.subr.bf16.mxu0 0
      %728 = vmatpush1.bf16.msra.mxu0 0
      %729 = vmatprep.subr.bf16.mxu0 0
      %730 = vmatpush1.bf16.msra.mxu0 0
      %731 = vmatprep.subr.bf16.mxu0 0
      %732 = vmatpush1.bf16.msra.mxu0 0
      %733 = vmatprep.subr.bf16.mxu0 0
      %734 = vmatpush1.bf16.msra.mxu0 0
      %735 = vmatprep.subr.bf16.mxu0 0
      %736 = vmatpush1.bf16.msra.mxu0 0
      %737 = vmatprep.subr.bf16.mxu0 0
      %738 = vmatpush1.bf16.msra.mxu0 0
      %739 = vmatprep.subr.bf16.mxu0 0
      %740 = vmatpush1.bf16.msra.mxu0 0
      %741 = vmatprep.subr.bf16.mxu0 0
      %742 = vmatpush1.bf16.msra.mxu0 0
      %743 = vmatprep.subr.bf16.mxu0 0
      %744 = vmatpush1.bf16.msra.mxu0 0
      %745 = vmatprep.subr.bf16.mxu0 0
      %746 = vmatpush1.bf16.msra.mxu0 0
      %747 = vmatprep.subr.bf16.mxu0 0
      %748 = vmatpush1.bf16.msra.mxu0 0
      %749 = vmatprep.subr.bf16.mxu0 0
      %750 = vmatpush1.bf16.msra.mxu0 0
      %751 = vmatprep.subr.bf16.mxu0 0
      %752 = vmatpush1.bf16.msra.mxu0 0
      %753 = vmatprep.mubr.bf16.mxu0 0
      %754 = vmatmul.mubr.bf16.gmra.mrb[0].mxu0 %v709
      %v755 = vpop.f32.mrb[0].mxu0
      %v756 = vadd.f32 0.0, %v755
      %v757 = vpop.f32.mrb[0].mxu0
      %v758 = vadd.f32 0.0, %v757
      %v759 = vpop.f32.mrb[0].mxu0
      %v760 = vadd.f32 0.0, %v759
      %v761 = vpop.f32.mrb[0].mxu0
      %v762 = vadd.f32 0.0, %v761
      %763 = vmatprep.mubr.bf16.mxu0 0
      %764 = vmatmul.mubr.bf16.gmra.mrb[0].mxu0 %v712
      %v765 = vpop.f32.mrb[0].mxu0
      %v766 = vadd.f32 0.0, %v765
      %v767 = vpop.f32.mrb[0].mxu0
      %v768 = vadd.f32 0.0, %v767
      %v769 = vpop.f32.mrb[0].mxu0
      %v770 = vadd.f32 0.0, %v769
      %v771 = vpop.f32.mrb[0].mxu0
      %v772 = vadd.f32 0.0, %v771
      %773 = vdwg.mxu0
      %v778 = vunpack.c.l.b16 %v685
      %v779 = vunpack.c.l.b16 %v686
      %v780 = vunpack.c.l.b16 %v687
      %v781 = vunpack.c.l.b16 %v688
      %v782 = vpack.c.b16 %v779, %v778
      %v783 = vpack.c.b16 %v781, %v780
      %v785 = vsel %vm707, %v782, 0
      %v788 = vsel %vm707, %v783, 0
      %v791 = vsel %vm714, %v689, 0
      %v794 = vsel %vm714, %v690, 0
      %796 = vmatprep.subr.bf16.mxu0 %v794
      %797 = vmatpush1.bf16.msra.mxu0 %v791
      %798 = vmatprep.subr.bf16.mxu0 0
      %799 = vmatpush1.bf16.msra.mxu0 0
      %800 = vmatprep.subr.bf16.mxu0 0
      %801 = vmatpush1.bf16.msra.mxu0 0
      %802 = vmatprep.subr.bf16.mxu0 0
      %803 = vmatpush1.bf16.msra.mxu0 0
      %804 = vmatprep.subr.bf16.mxu0 0
      %805 = vmatpush1.bf16.msra.mxu0 0
      %806 = vmatprep.subr.bf16.mxu0 0
      %807 = vmatpush1.bf16.msra.mxu0 0
      %808 = vmatprep.subr.bf16.mxu0 0
      %809 = vmatpush1.bf16.msra.mxu0 0
      %810 = vmatprep.subr.bf16.mxu0 0
      %811 = vmatpush1.bf16.msra.mxu0 0
      %812 = vmatprep.subr.bf16.mxu0 0
      %813 = vmatpush1.bf16.msra.mxu0 0
      %814 = vmatprep.subr.bf16.mxu0 0
      %815 = vmatpush1.bf16.msra.mxu0 0
      %816 = vmatprep.subr.bf16.mxu0 0
      %817 = vmatpush1.bf16.msra.mxu0 0
      %818 = vmatprep.subr.bf16.mxu0 0
      %819 = vmatpush1.bf16.msra.mxu0 0
      %820 = vmatprep.subr.bf16.mxu0 0
      %821 = vmatpush1.bf16.msra.mxu0 0
      %822 = vmatprep.subr.bf16.mxu0 0
      %823 = vmatpush1.bf16.msra.mxu0 0
      %824 = vmatprep.subr.bf16.mxu0 0
      %825 = vmatpush1.bf16.msra.mxu0 0
      %826 = vmatprep.subr.bf16.mxu0 0
      %827 = vmatpush1.bf16.msra.mxu0 0
      %828 = vmatprep.mubr.bf16.mxu0 0
      %829 = vmatmul.mubr.bf16.gmra.mrb[0].mxu0 %v785
      %v830 = vpop.f32.mrb[0].mxu0
      %v831 = vadd.f32 %v756, %v830
      %v832 = vpop.f32.mrb[0].mxu0
      %v833 = vadd.f32 %v758, %v832
      %v834 = vpop.f32.mrb[0].mxu0
      %v835 = vadd.f32 %v760, %v834
      %v836 = vpop.f32.mrb[0].mxu0
      %v837 = vadd.f32 %v762, %v836
      %838 = vmatprep.mubr.bf16.mxu0 0
      %839 = vmatmul.mubr.bf16.gmra.mrb[0].mxu0 %v788
      %v840 = vpop.f32.mrb[0].mxu0
      %v841 = vadd.f32 %v766, %v840
      %v842 = vpop.f32.mrb[0].mxu0
      %v843 = vadd.f32 %v768, %v842
      %v844 = vpop.f32.mrb[0].mxu0
      %v845 = vadd.f32 %v770, %v844
      %v846 = vpop.f32.mrb[0].mxu0
      %v847 = vadd.f32 %v772, %v846
      %848 = vdwg.mxu0
      %v849 = vld [vmem:[%s5] sm:$0xf]
      %v850 = vld [vmem:[%s5 + $0x4] sm:$0xf]
      %v851 = vld [vmem:[%s5 + $0x8] sm:$0xf]
      %v852 = vld [vmem:[%s5 + $0xc] sm:$0xf]
      %v853 = vpack.c.bf16 %v591, %v591
      %v854 = vpack.c.bf16 %v592, %v592
      %v859 = vunpack.c.l.b16 %v849
      %v860 = vunpack.c.l.b16 %v850
      %v861 = vunpack.c.l.b16 %v851
      %v862 = vunpack.c.l.b16 %v852
      %v863 = vpack.c.b16 %v860, %v859
      %v864 = vpack.c.b16 %v862, %v861
      %v866 = vsel %vm707, %v863, 0
      %v869 = vsel %vm707, %v864, 0
      %v872 = vsel %vm714, %v853, 0
      %v875 = vsel %vm714, %v854, 0
      %877 = vmatprep.subr.bf16.mxu0 %v875
      %878 = vmatpush1.bf16.msra.mxu0 %v872
      %879 = vmatprep.subr.bf16.mxu0 0
      %880 = vmatpush1.bf16.msra.mxu0 0
      %881 = vmatprep.subr.bf16.mxu0 0
      %882 = vmatpush1.bf16.msra.mxu0 0
      %883 = vmatprep.subr.bf16.mxu0 0
      %884 = vmatpush1.bf16.msra.mxu0 0
      %885 = vmatprep.subr.bf16.mxu0 0
      %886 = vmatpush1.bf16.msra.mxu0 0
      %887 = vmatprep.subr.bf16.mxu0 0
      %888 = vmatpush1.bf16.msra.mxu0 0
      %889 = vmatprep.subr.bf16.mxu0 0
      %890 = vmatpush1.bf16.msra.mxu0 0
      %891 = vmatprep.subr.bf16.mxu0 0
      %892 = vmatpush1.bf16.msra.mxu0 0
      %893 = vmatprep.subr.bf16.mxu0 0
      %894 = vmatpush1.bf16.msra.mxu0 0
      %895 = vmatprep.subr.bf16.mxu0 0
      %896 = vmatpush1.bf16.msra.mxu0 0
      %897 = vmatprep.subr.bf16.mxu0 0
      %898 = vmatpush1.bf16.msra.mxu0 0
      %899 = vmatprep.subr.bf16.mxu0 0
      %900 = vmatpush1.bf16.msra.mxu0 0
      %901 = vmatprep.subr.bf16.mxu0 0
      %902 = vmatpush1.bf16.msra.mxu0 0
      %903 = vmatprep.subr.bf16.mxu0 0
      %904 = vmatpush1.bf16.msra.mxu0 0
      %905 = vmatprep.subr.bf16.mxu0 0
      %906 = vmatpush1.bf16.msra.mxu0 0
      %907 = vmatprep.subr.bf16.mxu0 0
      %908 = vmatpush1.bf16.msra.mxu0 0
      %909 = vmatprep.mubr.bf16.mxu0 0
      %910 = vmatmul.mubr.bf16.gmra.mrb[0].mxu0 %v866
      %v911 = vpop.f32.mrb[0].mxu0
      %v912 = vadd.f32 0.0, %v911
      %v913 = vpop.f32.mrb[0].mxu0
      %v914 = vadd.f32 0.0, %v913
      %v915 = vpop.f32.mrb[0].mxu0
      %v916 = vadd.f32 0.0, %v915
      %v917 = vpop.f32.mrb[0].mxu0
      %v918 = vadd.f32 0.0, %v917
      %919 = vmatprep.mubr.bf16.mxu0 0
      %920 = vmatmul.mubr.bf16.gmra.mrb[0].mxu0 %v869
      %v921 = vpop.f32.mrb[0].mxu0
      %v922 = vadd.f32 0.0, %v921
      %v923 = vpop.f32.mrb[0].mxu0
      %v924 = vadd.f32 0.0, %v923
      %v925 = vpop.f32.mrb[0].mxu0
      %v926 = vadd.f32 0.0, %v925
      %v927 = vpop.f32.mrb[0].mxu0
      %v928 = vadd.f32 0.0, %v927
      %929 = vdwg.mxu0
      %v930 = vadd.f32 %v831, %v912
      %v931 = vadd.f32 %v833, %v914
      %v932 = vadd.f32 %v835, %v916
      %v933 = vadd.f32 %v837, %v918
      %v934 = vadd.f32 %v841, %v922
      %v935 = vadd.f32 %v843, %v924
      %v936 = vadd.f32 %v845, %v926
      %v937 = vadd.f32 %v847, %v928
      %v938 = vld [vmem:[%s6] sm:$0xf]
      %v939 = vld [vmem:[%s6 + $0x4] sm:$0xf]
      %v940 = vld [vmem:[%s6 + $0x8] sm:$0xf]
      %v941 = vld [vmem:[%s6 + $0xc] sm:$0xf]
      %v942 = vpack.c.bf16 %v683, %v683
      %v943 = vpack.c.bf16 %v684, %v684
      %v948 = vunpack.c.l.b16 %v938
      %v949 = vunpack.c.l.b16 %v939
      %v950 = vunpack.c.l.b16 %v940
      %v951 = vunpack.c.l.b16 %v941
      %v952 = vpack.c.b16 %v949, %v948
      %v953 = vpack.c.b16 %v951, %v950
      %v955 = vsel %vm707, %v952, 0
      %v958 = vsel %vm707, %v953, 0
      %v961 = vsel %vm714, %v942, 0
      %v964 = vsel %vm714, %v943, 0
      %966 = vmatprep.subr.bf16.mxu0 %v964
      %967 = vmatpush1.bf16.msra.mxu0 %v961
      %968 = vmatprep.subr.bf16.mxu0 0
      %969 = vmatpush1.bf16.msra.mxu0 0
      %970 = vmatprep.subr.bf16.mxu0 0
      %971 = vmatpush1.bf16.msra.mxu0 0
      %972 = vmatprep.subr.bf16.mxu0 0
      %973 = vmatpush1.bf16.msra.mxu0 0
      %974 = vmatprep.subr.bf16.mxu0 0
      %975 = vmatpush1.bf16.msra.mxu0 0
      %976 = vmatprep.subr.bf16.mxu0 0
      %977 = vmatpush1.bf16.msra.mxu0 0
      %978 = vmatprep.subr.bf16.mxu0 0
      %979 = vmatpush1.bf16.msra.mxu0 0
      %980 = vmatprep.subr.bf16.mxu0 0
      %981 = vmatpush1.bf16.msra.mxu0 0
      %982 = vmatprep.subr.bf16.mxu0 0
      %983 = vmatpush1.bf16.msra.mxu0 0
      %984 = vmatprep.subr.bf16.mxu0 0
      %985 = vmatpush1.bf16.msra.mxu0 0
      %986 = vmatprep.subr.bf16.mxu0 0
      %987 = vmatpush1.bf16.msra.mxu0 0
      %988 = vmatprep.subr.bf16.mxu0 0
      %989 = vmatpush1.bf16.msra.mxu0 0
      %990 = vmatprep.subr.bf16.mxu0 0
      %991 = vmatpush1.bf16.msra.mxu0 0
      %992 = vmatprep.subr.bf16.mxu0 0
      %993 = vmatpush1.bf16.msra.mxu0 0
      %994 = vmatprep.subr.bf16.mxu0 0
      %995 = vmatpush1.bf16.msra.mxu0 0
      %996 = vmatprep.subr.bf16.mxu0 0
      %997 = vmatpush1.bf16.msra.mxu0 0
      %998 = vmatprep.mubr.bf16.mxu0 0
      %999 = vmatmul.mubr.bf16.gmra.mrb[0].mxu0 %v955
      %v1000 = vpop.f32.mrb[0].mxu0
      %v1001 = vadd.f32 0.0, %v1000
      %v1002 = vpop.f32.mrb[0].mxu0
      %v1003 = vadd.f32 0.0, %v1002
      %v1004 = vpop.f32.mrb[0].mxu0
      %v1005 = vadd.f32 0.0, %v1004
      %v1006 = vpop.f32.mrb[0].mxu0
      %v1007 = vadd.f32 0.0, %v1006
      %1008 = vmatprep.mubr.bf16.mxu0 0
      %1009 = vmatmul.mubr.bf16.gmra.mrb[0].mxu0 %v958
      %v1010 = vpop.f32.mrb[0].mxu0
      %v1011 = vadd.f32 0.0, %v1010
      %v1012 = vpop.f32.mrb[0].mxu0
      %v1013 = vadd.f32 0.0, %v1012
      %v1014 = vpop.f32.mrb[0].mxu0
      %v1015 = vadd.f32 0.0, %v1014
      %v1016 = vpop.f32.mrb[0].mxu0
      %v1017 = vadd.f32 0.0, %v1016
      %1018 = vdwg.mxu0
      %v1019 = vadd.f32 %v930, %v1001
      %v1020 = vadd.f32 %v931, %v1003
      %v1021 = vadd.f32 %v932, %v1005
      %v1022 = vadd.f32 %v933, %v1007
      %v1023 = vadd.f32 %v934, %v1011
      %v1024 = vadd.f32 %v935, %v1013
      %v1025 = vadd.f32 %v936, %v1015
      %v1026 = vadd.f32 %v937, %v1017
      %v1027 = vld [vmem:[%s7] sm:$0xff]
      %v1028 = vld [vmem:[%s7 + $0x8] sm:$0xff]
      %v1029 = vld [vmem:[%s7 + $0x10] sm:$0xff]
      %v1030 = vld [vmem:[%s7 + $0x18] sm:$0xff]
      %1032 = vset.pattern.permute.xlu0 0
      %1033 = vperm.xlu0 %1032, %v1027
      %v1034 = vpop.permute.xlu0 %1033
      %1037 = vset.pattern.permute.xlu0 0
      %1038 = vperm.xlu0 %1037, %v1028
      %v1039 = vpop.permute.xlu0 %1038
      %1042 = vset.pattern.permute.xlu0 0
      %1043 = vperm.xlu0 %1042, %v1029
      %v1044 = vpop.permute.xlu0 %1043
      %1047 = vset.pattern.permute.xlu0 0
      %1048 = vperm.xlu0 %1047, %v1030
      %v1049 = vpop.permute.xlu0 %1048
      %v1051 = vadd.f32 %v1019, %v1034
      %v1052 = vadd.f32 %v1020, %v1034
      %v1053 = vadd.f32 %v1021, %v1039
      %v1054 = vadd.f32 %v1022, %v1039
      %v1055 = vadd.f32 %v1023, %v1044
      %v1056 = vadd.f32 %v1024, %v1044
      %v1057 = vadd.f32 %v1025, %v1049
      %v1058 = vadd.f32 %v1026, %v1049
      %v1059 = vmax.f32 %v1051, 0.0
      %v1060 = vmax.f32 %v1052, 0.0
      %v1061 = vmax.f32 %v1053, 0.0
      %v1062 = vmax.f32 %v1054, 0.0
      %v1063 = vmax.f32 %v1055, 0.0
      %v1064 = vmax.f32 %v1056, 0.0
      %v1065 = vmax.f32 %v1057, 0.0
      %v1066 = vmax.f32 %v1058, 0.0
      %1067 = vst [vmem:[%s305] sm:$0xff] %v1059
      %1068 = vst [vmem:[%s305 + $0x8] sm:$0xff] %v1060
      %1069 = vst [vmem:[%s305 + $0x10] sm:$0xff] %v1061
      %1070 = vst [vmem:[%s305 + $0x18] sm:$0xff] %v1062
      %1071 = vst [vmem:[%s305 + $0x20] sm:$0xff] %v1063
      %1072 = vst [vmem:[%s305 + $0x28] sm:$0xff] %v1064
      %1073 = vst [vmem:[%s305 + $0x30] sm:$0xff] %v1065
      %1074 = vst [vmem:[%s305 + $0x38] sm:$0xff] %v1066
      %p1075 = scmp.lt.s32.totalorder %s19, 1
      %s1076 = scalar_select %p1075, %s19, 1
      %s1077 = smul.addr %s1076, 8
      %s1078 = smul.addr %s1077, 8
      %s1079 = scalar_lea.vmem %s8, %s1078
      // Predicated region
      $region53: #{sim_sppf_forward.1} parent=51 // pred_check
        %p1080 = pneg %p210
      $region54: #{sim_sppf_forward.1} parent=51 // pred_check_branch
        %1082 = sbr.rel (%p1080) target = $region56
      $region55: #{sim_sppf_forward.1} parent=51 // pred_region
        _
      $region56: #{sim_sppf_forward.1} parent=51 // pred_fallthru
        _
    $region52: #{sim_sppf_forward.1} parent=5 // pred_fallthru
      _
    %p1083 = scmp.le.s32.totalorder 2, %s14
    // Predicated region
    $region57: #{sim_sppf_forward.1} parent=5 // pred_check
      %p1084 = pneg %p1083
    $region58: #{sim_sppf_forward.1} parent=5 // pred_check_branch
      %1086 = sbr.rel (%p1084) target = $region60
    $region59: #{sim_sppf_forward.1} parent=5 // pred_region
      %s1087 = ssub.s32 %s14, 2
      // Predicated region
      $region61: #{sim_sppf_forward.1} parent=59 // pred_check
        %p1088 = pneg %p216
      $region62: #{sim_sppf_forward.1} parent=59 // pred_check_branch
        %1090 = sbr.rel (%p1088) target = $region64
      $region63: #{sim_sppf_forward.1} parent=59 // pred_region
        %p1091 = scmp.lt.s32.totalorder %s20, 1
        %s1092 = scalar_select %p1091, %s20, 1
        %s1093 = smul.addr %s1092, 8
        %s1094 = smul.addr %s1093, 8
        %s1095 = scalar_lea.vmem %s8, %s1094
      $region64: #{sim_sppf_forward.1} parent=59 // pred_fallthru
        _
    $region60: #{sim_sppf_forward.1} parent=5 // pred_fallthru
      _
  $region6: #{sim_sppf_forward.1} parent=0 // loop_footer
    %s18 = sadd.s32 1, %s14
  $region7: #{sim_sppf_forward.1} parent=0 // loop_footer_branch
    %13 = sbr.rel target = $region3
  $region8: #{sim_sppf_forward.1} parent=0 // loop_exit
    _

</llo_original>
